<compile_context>
chip_gen: v6e
topology: v6e:2x2x1
jax: 0.10.0
libtpu: 0.0.40
codegen_flags: <defaults>
</compile_context>

<pallas_src>
import math

import jax
import jax.numpy as jnp
from jax.experimental import pallas as pl
from jax.experimental.pallas import tpu as pltpu


def _round_up(x, m):
    return ((x + m - 1) // m) * m


# -----------------------------------------------------------------------------
# Fast path: weight/bias fully VMEM-resident, grid only over batch tiles.
# -----------------------------------------------------------------------------
def _linear_resident_kernel(x_ref, wt_ref, b_ref, o_ref):
    # x_ref : (tm, F)   streamed activation tile
    # wt_ref: (F, Op)   full weight in natural (K, N) layout, resident
    # b_ref : (1, Op)   full bias, resident
    # o_ref : (tm, Op)  lane-dense output tile
    o_ref[...] = (
        jnp.dot(x_ref[...], wt_ref[...], preferred_element_type=jnp.float32)
        + b_ref[...]
    ).astype(o_ref.dtype)


# -----------------------------------------------------------------------------
# Fallback: full (B, O, F) tiling with f32 accumulator (only used when the
# weight is too large to keep resident in VMEM).
# -----------------------------------------------------------------------------
def _linear_tiled_kernel(x_ref, wt_ref, b_ref, o_ref, acc_ref):
    k = pl.program_id(2)

    @pl.when(k == 0)
    def _():
        acc_ref[...] = jnp.zeros_like(acc_ref)

    acc_ref[...] += jnp.dot(x_ref[...], wt_ref[...],
                            preferred_element_type=jnp.float32)

    @pl.when(k == pl.num_programs(2) - 1)
    def _():
        o_ref[...] = (acc_ref[...] + b_ref[...]).astype(o_ref.dtype)


def _pick_batch_tile(B, tm_max):
    """Batch tile: <= tm_max, multiple of 8 (or the full batch), dividing B when
    possible so x never needs a wrapper-side pad copy."""
    if B <= tm_max:
        # Expose >= 2 'parallel' blocks for v7x's two TensorCores when the
        # batch is big enough to be worth splitting.
        if B >= 256 and B % 16 == 0:
            return B // 2
        return B
    best = 0
    for t in range(8, tm_max + 1, 8):
        if B % t == 0:
            best = t
    if best >= 64:
        return best
    return tm_max  # no good divisor: fall back to padding the batch remainder


def linear_probe_forward(x, weight, bias, *, tm_max=512):
    """LinearProbeModel.forward(x) == x @ weight.T + bias.

    x: (B, F) float32, weight: (O, F) float32 (PyTorch nn.Linear layout),
    bias: (O,) float32. Returns (B, O) float32.
    """
    B, F = x.shape
    O, F_w = weight.shape
    assert F == F_w, "weight feature dim mismatch"
    itemsize = x.dtype.itemsize

    # One-time prep of the (small) parameters: natural (K, N) = (F, Op) MXU
    # layout; O padded to a lane-dense multiple of 128 and sliced off at the end.
    Op = _round_up(O, 128)
    wt = jnp.pad(weight.T, ((0, 0), (0, Op - O)))       # (F, Op)
    bp = jnp.pad(bias, (0, Op - O)).reshape(1, Op)      # (1, Op)

    tm = _pick_batch_tile(B, tm_max)
    Bp = _round_up(B, tm)
    nb = Bp // tm

    # VMEM budget for the resident path (count 2 buffers for the resident
    # params, 2-3 for the streamed x tile, 2 for the output tile).
    n_xbuf = 3 if nb >= 3 else 2
    est = (2 * (F * Op + Op) + n_xbuf * tm * F + 2 * tm * Op) * itemsize
    fast_ok = est <= 40 * 1024 * 1024

    if fast_ok:
        xp = x if Bp == B else jnp.pad(x, ((0, Bp - B), (0, 0)))
        vmem_limit = int(min(48 << 20, max(32 << 20, est + (4 << 20))))

        x_spec = pl.BlockSpec((tm, F), lambda i: (i, 0))
        if nb >= 3:
            # Deeper buffering on the single streamed operand hides DMA that is
            # still exposed behind the cheap per-tile compute.
            x_spec = pl.BlockSpec((tm, F), lambda i: (i, 0),
                                  pipeline_mode=pl.Buffered(3))

        out = pl.pallas_call(
            _linear_resident_kernel,
            out_shape=jax.ShapeDtypeStruct((Bp, Op), x.dtype),
            grid_spec=pltpu.PrefetchScalarGridSpec(
                num_scalar_prefetch=0,
                grid=(nb,),
                in_specs=[
                    x_spec,                                   # streamed x tile
                    pl.BlockSpec((F, Op), lambda i: (0, 0)),  # resident weight
                    pl.BlockSpec((1, Op), lambda i: (0, 0)),  # resident bias
                ],
                out_specs=pl.BlockSpec((tm, Op), lambda i: (i, 0)),
            ),
            compiler_params=pltpu.CompilerParams(
                dimension_semantics=("parallel",),
                vmem_limit_bytes=vmem_limit,
            ),
        )(xp, wt, bp)
        return out[:B, :O]

    # ---------------- Fallback: tiled K-reduction for huge weights -----------
    tn = math.gcd(Op, 256)                       # divides Op, lane-dense
    tk = min(1024, _round_up(F, 128))            # tk <= 1024 is v7x-safe
    tmf = min(512, _round_up(B, 8))
    Bpf = _round_up(B, tmf)
    Fp = _round_up(F, tk)
    # TODO(synk): the K/B tails could be masked in-kernel to avoid this x copy.
    xp = x if (Bpf == B and Fp == F) else jnp.pad(x, ((0, Bpf - B), (0, Fp - F)))
    wtp = wt if Fp == F else jnp.pad(wt, ((0, Fp - F), (0, 0)))

    out = pl.pallas_call(
        _linear_tiled_kernel,
        out_shape=jax.ShapeDtypeStruct((Bpf, Op), x.dtype),
        grid_spec=pltpu.PrefetchScalarGridSpec(
            num_scalar_prefetch=0,
            grid=(Bpf // tmf, Op // tn, Fp // tk),
            in_specs=[
                pl.BlockSpec((tmf, tk), lambda i, j, k: (i, k)),   # x tile
                pl.BlockSpec((tk, tn), lambda i, j, k: (k, j)),    # W (F,O) tile
                pl.BlockSpec((1, tn), lambda i, j, k: (0, j)),     # bias tile
            ],
            out_specs=pl.BlockSpec((tmf, tn), lambda i, j, k: (i, j)),
            scratch_shapes=[pltpu.VMEM((tmf, tn), jnp.float32)],
        ),
        compiler_params=pltpu.CompilerParams(
            dimension_semantics=("parallel", "parallel", "arbitrary"),
            vmem_limit_bytes=48 << 20,
        ),
    )(xp, wtp, bp)
    return out[:B, :O]


if __name__ == "__main__":
    # Small shapes consistent with the module: (batch, feature) representation.
    batch = 8
    input_size = 32
    output_size = 16

    key = jax.random.PRNGKey(0)
    kx, kw, kb = jax.random.split(key, 3)

    # Deterministic parameter init mimicking torch.nn.Linear's default
    # uniform(-1/sqrt(fan_in), 1/sqrt(fan_in)).
    bound = 1.0 / jnp.sqrt(jnp.float32(input_size))
    weight = jax.random.uniform(kw, (output_size, input_size),
                                minval=-bound, maxval=bound, dtype=jnp.float32)
    bias = jax.random.uniform(kb, (output_size,),
                              minval=-bound, maxval=bound, dtype=jnp.float32)

    x = jax.random.normal(kx, (batch, input_size), dtype=jnp.float32)

    out = linear_probe_forward(x, weight, bias)
    out = jax.block_until_ready(out)

    # Correctness check vs. plain JAX reference of nn.Linear semantics.
    ref = x @ weight.T + bias
    assert out.shape == (batch, output_size)
    assert jnp.allclose(out, ref, atol=1e-5, rtol=1e-5), "mismatch vs reference"

    # TODO(synk): step_loss (cross-entropy + L1/L2 reg + SGD/Adam update) is a
    # training routine, not part of the forward pass; not kernelized here.
    print("KERNEL_OK")
</pallas_src>

<mosaic_0001>
module attributes {stable_mosaic.version = 11 : i64} {
  func.func @_linear_resident_kernel(%arg0: i32, %arg1: memref<8x32xf32, #tpu.memory_space<vmem>>, %arg2: memref<32x128xf32, #tpu.memory_space<vmem>>, %arg3: memref<1x128xf32, #tpu.memory_space<vmem>>, %arg4: memref<8x128xf32, #tpu.memory_space<vmem>>) attributes {dimension_semantics = [#tpu.dimension_semantics<parallel>], iteration_bounds = array<i64: 1>, scalar_prefetch = 0 : i64, scratch_operands = 0 : i64, tpu.core_type = #tpu.core_type<tc>, window_params = [{transform_indices = @transform_0, window_bounds = array<i64: 8, 32>}, {pipeline_mode = #tpu.pipeline_mode<synchronous>, transform_indices = @transform_1, window_bounds = array<i64: 32, 128>}, {pipeline_mode = #tpu.pipeline_mode<synchronous>, transform_indices = @transform_2, window_bounds = array<i64: 1, 128>}, {transform_indices = @transform_3, window_bounds = array<i64: 8, 128>}]} {
    %c0 = arith.constant 0 : index
    %c0_0 = arith.constant 0 : index
    %0 = vector.load %arg1[%c0, %c0_0] : memref<8x32xf32, #tpu.memory_space<vmem>>, vector<8x32xf32>
    %c0_1 = arith.constant 0 : index
    %c0_2 = arith.constant 0 : index
    %1 = vector.load %arg2[%c0_1, %c0_2] : memref<32x128xf32, #tpu.memory_space<vmem>>, vector<32x128xf32>
    %cst = arith.constant dense<0.000000e+00> : vector<8x128xf32>
    %2 = tpu.matmul %0, %1, %cst {dimension_numbers = #tpu.dot_dimension_numbers<[1], [0], [0], [1], [0, 0, 1, 1], [], []>} : vector<8x32xf32>, vector<32x128xf32>, vector<8x128xf32> -> vector<8x128xf32>
    %c0_3 = arith.constant 0 : index
    %c0_4 = arith.constant 0 : index
    %3 = vector.load %arg3[%c0_3, %c0_4] : memref<1x128xf32, #tpu.memory_space<vmem>>, vector<1x128xf32>
    %4 = vector.broadcast %3 : vector<1x128xf32> to vector<8x128xf32>
    %5 = arith.addf %2, %4 : vector<8x128xf32>
    %c0_5 = arith.constant 0 : index
    %c0_6 = arith.constant 0 : index
    %6 = vector.load %arg4[%c0_5, %c0_6] : memref<8x128xf32, #tpu.memory_space<vmem>>, vector<8x128xf32>
    tpu.vector_store %arg4[%c0_5, %c0_6], %5 {strides = array<i32>} : memref<8x128xf32, #tpu.memory_space<vmem>>, vector<8x128xf32>,
    return
  }
  func.func @transform_0(%arg0: i32) -> (i32, i32) {
    %c0_i32 = arith.constant 0 : i32
    %c0_i32_0 = arith.constant 0 : i32
    return %arg0, %c0_i32 : i32, i32
  }
  func.func @transform_1(%arg0: i32) -> (i32, i32) {
    %c0_i32 = arith.constant 0 : i32
    %c0_i32_0 = arith.constant 0 : i32
    %c0_i32_1 = arith.constant 0 : i32
    return %c0_i32, %c0_i32_0 : i32, i32
  }
  func.func @transform_2(%arg0: i32) -> (i32, i32) {
    %c0_i32 = arith.constant 0 : i32
    %c0_i32_0 = arith.constant 0 : i32
    %c0_i32_1 = arith.constant 0 : i32
    return %c0_i32, %c0_i32_0 : i32, i32
  }
  func.func @transform_3(%arg0: i32) -> (i32, i32) {
    %c0_i32 = arith.constant 0 : i32
    %c0_i32_0 = arith.constant 0 : i32
    return %arg0, %c0_i32 : i32, i32
  }
}

</mosaic_0001>

<llo_original>
// kernel: tpu_custom_call.1
$region0: #{tpu_custom_call.1}
  #allocation0 [shape = 'u32[]', space=smem, size = 0x4, offset = 0x4, fixed_abs, tag = 'smem constant byte address 0x4 - core index']
  #allocation1 [shape = 'u32[144,128]{1,0:T(1,128)}', space=vmem, size = 0x12000, scoped, tag = 'internal scratch']
  %s0 = inlined_call_operand.hbm [shape: f32[8,32], index: 0, kind: input, shape index: {}]
  %s1 = inlined_call_operand.hbm [shape: f32[32,128], index: 1, kind: input, shape index: {}]
  %s2 = inlined_call_operand.vmem [shape: f32[1,128], index: 2, kind: input, shape index: {}]
  %s3 = inlined_call_operand.hbm [shape: f32[8,128], index: 3, kind: output, shape index: {}]
  %s4 = sld [smem:[#allocation0]]
  $region30: #{tpu_custom_call.1} parent=0
    _
  %s6 = ssub.s32 1, %s4
  %s7 = scalar_select 0, %s6, %s4
  $region1: #{tpu_custom_call.1} parent=0
    #allocation2 [shape = 'u8[4096]{0}', space=vmem, size = 0x1000, scoped, tag = 'input window, operand 0, single buffered']
    #allocation3 [shape = 's32[1]{0}', space=sflag, size = 0x4, scoped, tag = 'scoped memory for tpu_custom_call.1']
    #allocation4 [shape = 's32[1]{0}', space=sflag, size = 0x4, scoped, tag = 'scoped memory for tpu_custom_call.1']
    #allocation5 [shape = 'u8[16384]{0}', space=vmem, size = 0x4000, scoped, tag = 'input window, operand 1, single buffered']
    #allocation6 [shape = 's32[1]{0}', space=sflag, size = 0x4, scoped, tag = 'scoped memory for tpu_custom_call.1']
    #allocation7 [shape = 'u8[4096]{0}', space=vmem, size = 0x1000, scoped, tag = 'output window, operand 0, single buffered']
    %8 = vsyncpa [#allocation3], 0
    %9 = vsyncpa [#allocation6], 0
    %10 = vsyncpa [#allocation4], 0
    // Predicated region
    $region2: #{tpu_custom_call.1} parent=1 // pred_check
      _
    $region3: #{tpu_custom_call.1} parent=1 // pred_check_branch
      %12 = sbr.rel (0) target = $region5
    $region4: #{tpu_custom_call.1} parent=1 // pred_region
      %s14 = ssub.s32 128, 128
      %15 = vsyncadd [#allocation3], %s14
      %s17 = sshll.u32 [#allocation2], 4
      %s18 = int_to_ptr.vmem [resolvable:$true] %s17
      %20 = dma.hbm_to_vmem [thread:$0]  %s0, 128, %s18, [#allocation3]
    $region5: #{tpu_custom_call.1} parent=1 // pred_fallthru
      _
    // Predicated region
    $region6: #{tpu_custom_call.1} parent=1 // pred_check
      _
    $region7: #{tpu_custom_call.1} parent=1 // pred_check_branch
      %22 = sbr.rel (0) target = $region9
    $region8: #{tpu_custom_call.1} parent=1 // pred_region
      %s24 = ssub.s32 512, 512
      %25 = vsyncadd [#allocation6], %s24
      %s26 = sshll.u32 [#allocation5], 4
      %s27 = int_to_ptr.vmem [resolvable:$true] %s26
      %32 = dma.hbm_to_vmem [thread:$0]  %s1, 512, %s27, [#allocation6], 128, 128, 8
    $region9: #{tpu_custom_call.1} parent=1 // pred_fallthru
      _
    // Predicated region
    $region10: #{tpu_custom_call.1} parent=1 // pred_check
      _
    $region11: #{tpu_custom_call.1} parent=1 // pred_check_branch
      %34 = sbr.rel (0) target = $region13
    $region12: #{tpu_custom_call.1} parent=1 // pred_region
      _
    $region13: #{tpu_custom_call.1} parent=1 // pred_fallthru
      _
    // Predicated region
    $region14: #{tpu_custom_call.1} parent=1 // pred_check
      _
    $region15: #{tpu_custom_call.1} parent=1 // pred_check_branch
      %36 = sbr.rel (0) target = $region17
    $region16: #{tpu_custom_call.1} parent=1 // pred_region
      %37 = dma.done [#allocation3], 128
    $region17: #{tpu_custom_call.1} parent=1 // pred_fallthru
      _
    // Predicated region
    $region18: #{tpu_custom_call.1} parent=1 // pred_check
      _
    $region19: #{tpu_custom_call.1} parent=1 // pred_check_branch
      %39 = sbr.rel (0) target = $region21
    $region20: #{tpu_custom_call.1} parent=1 // pred_region
      %40 = dma.done [#allocation6], 512
    $region21: #{tpu_custom_call.1} parent=1 // pred_fallthru
      _
    %v41 = vld [vmem:[#allocation2] sm:$0xff]
    %v42 = vld [vmem:[#allocation5] sm:$0xff]
    %v43 = vld [vmem:[#allocation5 + $0x8] sm:$0xff]
    %v44 = vld [vmem:[#allocation5 + $0x10] sm:$0xff]
    %v45 = vld [vmem:[#allocation5 + $0x18] sm:$0xff]
    %v46 = vld [vmem:[%s2] sm:$0x1]
    %v48 = vlaneseq
    %v49 = vshrl.u32 %v48, 7
    %v50 = vsub.s32 0, %v49
    %v51 = vrot.slane %v46, %v50
    %vm53 = vcmask 261120
    %v55 = vsel %vm53, %v41, 0
    %57 = vmatprep.subr.mxu0 0.0
    %58 = vmatpush1.msra.mxu0 0.0
    %59 = vmatprep.subr.mxu0 0.0
    %60 = vmatpush1.msra.mxu0 0.0
    %61 = vmatprep.subr.mxu0 0.0
    %62 = vmatpush1.msra.mxu0 0.0
    %63 = vmatprep.subr.mxu0 0.0
    %64 = vmatpush1.msra.mxu0 0.0
    %65 = vmatprep.subr.mxu0 0.0
    %66 = vmatpush1.msra.mxu0 0.0
    %67 = vmatprep.subr.mxu0 0.0
    %68 = vmatpush1.msra.mxu0 0.0
    %69 = vmatprep.subr.mxu0 0.0
    %70 = vmatpush1.msra.mxu0 0.0
    %71 = vmatprep.subr.mxu0 0.0
    %72 = vmatpush1.msra.mxu0 0.0
    %73 = vmatprep.subr.mxu0 0.0
    %74 = vmatpush1.msra.mxu0 0.0
    %75 = vmatprep.subr.mxu0 0.0
    %76 = vmatpush1.msra.mxu0 0.0
    %77 = vmatprep.subr.mxu0 0.0
    %78 = vmatpush1.msra.mxu0 0.0
    %79 = vmatprep.subr.mxu0 0.0
    %80 = vmatpush1.msra.mxu0 0.0
    %81 = vmatprep.subr.mxu0 0.0
    %82 = vmatpush1.msra.mxu0 %v45
    %83 = vmatprep.subr.mxu0 0.0
    %84 = vmatpush1.msra.mxu0 %v44
    %85 = vmatprep.subr.mxu0 0.0
    %86 = vmatpush1.msra.mxu0 %v43
    %87 = vmatprep.subr.mxu0 0.0
    %88 = vmatpush1.msra.mxu0 %v42
    %89 = vmatprep.subr.mxu0 0.0
    %90 = vmatpush2.msra.mxu0 0.0
    %91 = vmatprep.subr.mxu0 0.0
    %92 = vmatpush2.msra.mxu0 0.0
    %93 = vmatprep.subr.mxu0 0.0
    %94 = vmatpush2.msra.mxu0 0.0
    %95 = vmatprep.subr.mxu0 0.0
    %96 = vmatpush2.msra.mxu0 0.0
    %97 = vmatprep.subr.mxu0 0.0
    %98 = vmatpush2.msra.mxu0 0.0
    %99 = vmatprep.subr.mxu0 0.0
    %100 = vmatpush2.msra.mxu0 0.0
    %101 = vmatprep.subr.mxu0 0.0
    %102 = vmatpush2.msra.mxu0 0.0
    %103 = vmatprep.subr.mxu0 0.0
    %104 = vmatpush2.msra.mxu0 0.0
    %105 = vmatprep.subr.mxu0 0.0
    %106 = vmatpush2.msra.mxu0 0.0
    %107 = vmatprep.subr.mxu0 0.0
    %108 = vmatpush2.msra.mxu0 0.0
    %109 = vmatprep.subr.mxu0 0.0
    %110 = vmatpush2.msra.mxu0 0.0
    %111 = vmatprep.subr.mxu0 0.0
    %112 = vmatpush2.msra.mxu0 0.0
    %113 = vmatprep.subr.mxu0 0.0
    %114 = vmatpush2.msra.mxu0 0.0
    %115 = vmatprep.subr.mxu0 0.0
    %116 = vmatpush2.msra.mxu0 0.0
    %117 = vmatprep.subr.mxu0 0.0
    %118 = vmatpush2.msra.mxu0 0.0
    %119 = vmatprep.subr.mxu0 0.0
    %120 = vmatpush2.msra.mxu0 0.0
    %121 = vmatprep.mubr.f32.mxu0 0.0
    %122 = vmatmul.mubr.f32.gmra.mxu0 %v55
    %v123 = vpop.f32.mrf.mxu0
    %v124 = vadd.f32 %v51, %v123
    %v125 = vpop.f32.mrf.mxu0
    %126 = vdwg.mxu0
    %127 = vst [vmem:[#allocation7] sm:$0xff] %v124
    // Predicated region
    $region22: #{tpu_custom_call.1} parent=1 // pred_check
      _
    $region23: #{tpu_custom_call.1} parent=1 // pred_check_branch
      %129 = sbr.rel (0) target = $region25
    $region24: #{tpu_custom_call.1} parent=1 // pred_region
      %s131 = ssub.s32 128, 128
      %132 = vsyncadd [#allocation4], %s131
      %s134 = sshll.u32 [#allocation7], 4
      %s135 = int_to_ptr.vmem [resolvable:$true] %s134
      %137 = dma.vmem_to_hbm [thread:$0]  %s135, 128, %s3, [#allocation4]
    $region25: #{tpu_custom_call.1} parent=1 // pred_fallthru
      _
    // Predicated region
    $region26: #{tpu_custom_call.1} parent=1 // pred_check
      _
    $region27: #{tpu_custom_call.1} parent=1 // pred_check_branch
      %139 = sbr.rel (0) target = $region29
    $region28: #{tpu_custom_call.1} parent=1 // pred_region
      %140 = dma.done [#allocation4], 128
    $region29: #{tpu_custom_call.1} parent=1 // pred_fallthru
      _
    %141 = vsyncpa [#allocation3], 1
    %142 = vsyncpa [#allocation6], 1
    %143 = vsyncpa [#allocation4], 1

</llo_original>
